<compile_context>
chip_gen: v6e
topology: v6e:2x2x1
jax: 0.10.0
libtpu: 0.0.40
codegen_flags: <defaults>
</compile_context>

<pallas_src>
import numpy as np

import jax
import jax.numpy as jnp
from jax.experimental import pallas as pl
from jax.experimental.pallas import tpu as pltpu

EPS = 1e-5  # nn.BatchNorm2d default eps


def _round_up(x, m):
    return -(-x // m) * m


# --------------------------------------------------------------------------------------
# Kernels
# --------------------------------------------------------------------------------------
def _bn_stats_kernel(x_ref, sum_ref, sumsq_ref):
    """Accumulate lane-dense per-image partial sum / sum-of-squares over row tiles."""
    @pl.when(pl.program_id(1) == 0)
    def _():
        sum_ref[...] = jnp.zeros_like(sum_ref)
        sumsq_ref[...] = jnp.zeros_like(sumsq_ref)

    x = x_ref[0]                                    # (Cin, tRp, LANE) f32
    # Reduce only the (small) sublane row-tile axis; keep the lane axis intact so the
    # accumulator stays lane-dense and the per-step work is VPU adds.
    sum_ref[...] += jnp.sum(x, axis=1)[None]        # (1, Cin, LANE)
    sumsq_ref[...] += jnp.sum(x * x, axis=1)[None]  # (1, Cin, LANE)


def _transition_kernel(x_ref, scale_ref, bias_ref, w_ref, pw_ref, o_ref):
    """Fused BN affine + ReLU + 2x2 avg-pool + 1x1 conv for one (image, row-tile)."""
    _, cin, trp, lane = x_ref.shape
    kwo = pw_ref.shape[1]                           # k * Wo pooled pixels per packed row

    x = x_ref[0]                                    # (Cin, tRp, LANE) f32
    scale = scale_ref[...][:, None, :]              # (Cin, 1, LANE) sublane broadcast
    bias = bias_ref[...][:, None, :]

    y = jnp.maximum(x * scale + bias, 0.0)          # BatchNorm affine + ReLU (VPU)

    # 2x2 average pooling (vertical + horizontal, 1/4 folded in) as one small bf16
    # matmul against the pool matrix: rows = (channel, packed-row), lanes = LANE.
    y2 = y.reshape(cin * trp, lane).astype(jnp.bfloat16)
    vp = jnp.dot(y2, pw_ref[...], preferred_element_type=jnp.float32)   # (Cin*tRp, k*Wo)

    # 1x1 conv AFTER pooling (both linear -> they commute): (Cout,Cin) @ (Cin, S).
    # The lane-flatten relayout is done on bf16 data (half the bytes/vregs moved).
    p = vp.astype(jnp.bfloat16).reshape(cin, trp * kwo)
    out = jnp.dot(w_ref[...], p, preferred_element_type=jnp.float32)    # (Cout, tRp*k*Wo)

    o_ref[...] = out[None].astype(o_ref.dtype)      # lane-dense flat store


# --------------------------------------------------------------------------------------
# Host-side helpers
# --------------------------------------------------------------------------------------
def _make_pool_matrix(w, k):
    """(k*2W, k*Wo) matrix: 0.25 at the four source lanes of each pooled pixel."""
    wo = w // 2
    lane = k * 2 * w
    pm = np.zeros((lane, k * wo), np.float32)
    cols = np.arange(wo)
    for j in range(k):              # row-pair j within the packed group
        for r in (0, 1):            # row within the pair
            base = (2 * j + r) * w
            pm[base + 2 * cols, j * wo + cols] = 0.25
            pm[base + 2 * cols + 1, j * wo + cols] = 0.25
    return pm


def _pick_pack_factor(ho, w):
    """Pack k row-pairs onto the lane axis so (8,128) vregs stay well occupied."""
    lane0 = 2 * w
    best_k, best_cost = 1, None
    for k in range(1, ho + 1):
        if ho % k:
            continue
        lane = k * lane0
        if lane > 512:
            continue
        rp = ho // k
        sub = min(rp, 8)            # representative per-channel sublane occupancy
        cost = (_round_up(sub, 8) * _round_up(lane, 128)) / float(sub * lane)
        better = best_cost is None or cost < best_cost - 1e-9
        tie_bigger_lane = best_cost is not None and abs(cost - best_cost) <= 1e-9 and lane > best_k * lane0
        if better or tie_bigger_lane:
            best_k, best_cost = k, cost
    return best_k


def _vmem_budgets():
    """Generation-aware x-block budget and scoped-VMEM limit (padding-aware callers)."""
    cap = 64 * 1024 * 1024                                  # conservative default (v7x)
    try:
        cap = int(getattr(pltpu.get_tpu_info(), "vmem_capacity_bytes", cap))
    except Exception:
        pass
    vmem_limit = min(cap * 3 // 4, 96 * 1024 * 1024)        # 48 MiB on v7x, 96 MiB on v5e/v6e
    x_budget = min(cap // 8, 12 * 1024 * 1024)              # 8 MiB on v7x, 12 MiB on v5e/v6e
    return x_budget, vmem_limit


def _pick_tile_rows(rp, cin, lane, kwo, budget, itemsize=4):
    """Largest layout-legal row tile whose PADDED x block fits the VMEM budget."""
    def padded_bytes(t):
        return cin * _round_up(t, 8) * _round_up(lane, 128) * itemsize

    divs = [t for t in range(1, rp + 1) if rp % t == 0]
    legal = [t for t in divs
             if (t % 8 == 0 or t == rp)                      # sublane rule for the x block
             and (t == rp or (t * kwo) % 128 == 0)]          # lane rule for the flat out block
    fitting = [t for t in legal if padded_bytes(t) <= budget]
    if fitting:
        return max(fitting)
    # Nothing fits the soft budget: take the smallest legal tile (never silently pick a
    # bigger-than-budget tile when a smaller legal one exists; vmem_limit stays generous).
    return min(legal)


def transition_block_forward(x_nchw, gamma, beta, conv_w):
    """x: (N,Cin,H,W) f32; conv_w: (Cout,Cin,1,1). Returns (N,Cout,H//2,W//2) f32."""
    n, cin, h, w = x_nchw.shape
    cout = conv_w.shape[0]
    assert h % 2 == 0 and w % 2 == 0, "AvgPool2d(2,2) requires even H and W"
    ho, wo = h // 2, w // 2

    k = _pick_pack_factor(ho, w)        # row-pairs packed onto the lane axis
    lane = k * 2 * w                    # packed lane width
    rp = ho // k                        # packed rows per image
    kwo = k * wo                        # pooled pixels per packed row

    # Free contiguous reshape: k row-pairs become the lane axis.
    x4 = x_nchw.astype(jnp.float32).reshape(n, cin, rp, lane)

    x_budget, vmem_limit = _vmem_budgets()
    trp = _pick_tile_rows(rp, cin, lane, kwo, budget=x_budget)
    r = rp // trp

    # ---- Pass 1: per-channel batch statistics (training-mode BatchNorm). ----
    part_sum, part_sq = pl.pallas_call(
        _bn_stats_kernel,
        out_shape=(jax.ShapeDtypeStruct((n, cin, lane), jnp.float32),
                   jax.ShapeDtypeStruct((n, cin, lane), jnp.float32)),
        grid=(n, r),
        in_specs=[pl.BlockSpec((1, cin, trp, lane), lambda i, j: (i, 0, j, 0))],
        out_specs=(pl.BlockSpec((1, cin, lane), lambda i, j: (i, 0, 0)),
                   pl.BlockSpec((1, cin, lane), lambda i, j: (i, 0, 0))),
        compiler_params=pltpu.CompilerParams(
            dimension_semantics=("parallel", "arbitrary"),
            vmem_limit_bytes=vmem_limit),
        cost_estimate=pl.CostEstimate(
            flops=3 * n * cin * h * w, transcendentals=0,
            bytes_accessed=n * cin * h * w * 4 + 2 * n * cin * lane * 4),
    )(x4)

    # TODO(synk): nn.BatchNorm2d's running_mean / running_var buffer updates (training
    # side effect) are not produced; only the forward output is computed.
    count = n * h * w
    sums = jnp.sum(part_sum, axis=(0, 2))                   # (Cin,)
    sumsqs = jnp.sum(part_sq, axis=(0, 2))                  # (Cin,)
    mean = sums / count
    # TODO(synk): E[x^2]-E[x]^2 in f32 can lose precision vs a two-pass/Welford variance
    # for huge, strongly-offset inputs; the clamp keeps it non-negative.
    var = jnp.maximum(sumsqs / count - mean * mean, 0.0)    # biased var (PyTorch training)
    scale = gamma / jnp.sqrt(var + EPS)
    bias = beta - mean * scale
    scale_b = jnp.broadcast_to(scale[:, None], (cin, lane))  # tiny, lane-dense layout
    bias_b = jnp.broadcast_to(bias[:, None], (cin, lane))

    w2 = conv_w.reshape(cout, cin).astype(jnp.bfloat16)      # (Cout, Cin) for the MXU
    pw = jnp.asarray(_make_pool_matrix(w, k), jnp.bfloat16)  # 0.25 is exact in bf16

    # ---- Pass 2: fused normalize + ReLU + avg-pool + 1x1 conv. ----
    out_flat = pl.pallas_call(
        _transition_kernel,
        out_shape=jax.ShapeDtypeStruct((n, cout, ho * wo), jnp.float32),
        grid=(n, r),
        in_specs=[
            pl.BlockSpec((1, cin, trp, lane), lambda i, j: (i, 0, j, 0)),
            pl.BlockSpec((cin, lane), lambda i, j: (0, 0)),
            pl.BlockSpec((cin, lane), lambda i, j: (0, 0)),
            pl.BlockSpec((cout, cin), lambda i, j: (0, 0)),
            pl.BlockSpec((lane, kwo), lambda i, j: (0, 0)),
        ],
        out_specs=pl.BlockSpec((1, cout, trp * kwo), lambda i, j: (i, 0, j)),
        compiler_params=pltpu.CompilerParams(
            dimension_semantics=("parallel", "parallel"),
            vmem_limit_bytes=vmem_limit),
        cost_estimate=pl.CostEstimate(
            flops=n * (3 * cin * h * w + 2 * cin * rp * lane * kwo + 2 * cout * cin * ho * wo),
            transcendentals=0,
            bytes_accessed=(n * cin * h * w * 4 + n * cout * ho * wo * 4
                            + 2 * cin * lane * 4 + cout * cin * 2 + lane * kwo * 2)),
    )(x4, scale_b, bias_b, w2, pw)

    # Free contiguous reshape back to the NCHW output layout
    # (flat index rp*(k*Wo) + j*Wo + c == (rp*k + j)*Wo + c == ho*Wo + wo).
    return out_flat.reshape(n, cout, ho, wo)


# --------------------------------------------------------------------------------------
# Pure-JAX reference (mirrors the PyTorch forward, training-mode BN, full f32)
# --------------------------------------------------------------------------------------
def _reference(x_nchw, gamma, beta, conv_w):
    x = x_nchw.astype(jnp.float32)
    mean = jnp.mean(x, axis=(0, 2, 3), keepdims=True)
    var = jnp.var(x, axis=(0, 2, 3), keepdims=True)
    y = (x - mean) / jnp.sqrt(var + EPS)
    y = y * gamma[None, :, None, None] + beta[None, :, None, None]
    y = jnp.maximum(y, 0.0)
    w2 = conv_w.reshape(conv_w.shape[0], conv_w.shape[1])
    z = jnp.einsum('nchw,oc->nohw', y, w2)
    nn_, co, hh, ww = z.shape
    return z.reshape(nn_, co, hh // 2, 2, ww // 2, 2).mean(axis=(3, 5))


if __name__ == "__main__":
    key = jax.random.PRNGKey(0)
    k_x, k_w = jax.random.split(key)

    N, Cin, H, W = 2, 4, 16, 16       # input_filters = 4
    Cout = 8                          # output_filters = 8

    x = jax.random.normal(k_x, (N, Cin, H, W), jnp.float32)
    gamma = jnp.ones((Cin,), jnp.float32)     # BatchNorm2d weight (PyTorch default init)
    beta = jnp.zeros((Cin,), jnp.float32)     # BatchNorm2d bias
    bound = 1.0 / (Cin ** 0.5)                # Conv2d kaiming-uniform bound (fan_in = Cin)
    conv_w = jax.random.uniform(k_w, (Cout, Cin, 1, 1), jnp.float32, -bound, bound)

    out = jax.block_until_ready(transition_block_forward(x, gamma, beta, conv_w))
    ref = _reference(x, gamma, beta, conv_w)

    assert out.shape == (N, Cout, H // 2, W // 2), out.shape
    # Tolerance reflects bf16 MXU operands for the pool / 1x1-conv matmuls (f32 accumulate).
    max_err = float(jnp.max(jnp.abs(out - ref)))
    assert jnp.allclose(out, ref, atol=5e-2, rtol=5e-2), max_err
    print("KERNEL_OK")
</pallas_src>

<mosaic_0001>
module attributes {stable_mosaic.version = 11 : i64} {
  func.func @_bn_stats_kernel(%arg0: i32, %arg1: i32, %arg2: memref<1x4x2x128xf32, #tpu.memory_space<vmem>>, %arg3: memref<1x4x128xf32, #tpu.memory_space<vmem>>, %arg4: memref<1x4x128xf32, #tpu.memory_space<vmem>>) attributes {dimension_semantics = [#tpu.dimension_semantics<parallel>, #tpu.dimension_semantics<arbitrary>], iteration_bounds = array<i64: 2, 1>, scalar_prefetch = 0 : i64, scratch_operands = 0 : i64, tpu.core_type = #tpu.core_type<tc>, window_params = [{transform_indices = @transform_0, window_bounds = array<i64: 1, 4, 2, 128>}, {transform_indices = @transform_1, window_bounds = array<i64: 1, 4, 128>}, {transform_indices = @transform_2, window_bounds = array<i64: 1, 4, 128>}]} {
    %c0_i32 = arith.constant 0 : i32
    %0 = arith.cmpi eq, %arg1, %c0_i32 : i32
    %1 = arith.extui %0 : i1 to i32
    %c0_i32_0 = arith.constant 0 : i32
    %2 = arith.cmpi ne, %1, %c0_i32_0 : i32
    scf.if %2 {
      %cst_17 = arith.constant 0.000000e+00 : f32
      %16 = vector.broadcast %cst_17 : f32 to vector<1x4x128xf32>
      %c0_18 = arith.constant 0 : index
      %c0_19 = arith.constant 0 : index
      %c0_20 = arith.constant 0 : index
      %17 = vector.load %arg3[%c0_18, %c0_19, %c0_20] : memref<1x4x128xf32, #tpu.memory_space<vmem>>, vector<1x4x128xf32>
      tpu.vector_store %arg3[%c0_18, %c0_19, %c0_20], %16 {strides = array<i32>} : memref<1x4x128xf32, #tpu.memory_space<vmem>>, vector<1x4x128xf32>,
      %cst_21 = arith.constant 0.000000e+00 : f32
      %18 = vector.broadcast %cst_21 : f32 to vector<1x4x128xf32>
      %c0_22 = arith.constant 0 : index
      %c0_23 = arith.constant 0 : index
      %c0_24 = arith.constant 0 : index
      %19 = vector.load %arg4[%c0_22, %c0_23, %c0_24] : memref<1x4x128xf32, #tpu.memory_space<vmem>>, vector<1x4x128xf32>
      tpu.vector_store %arg4[%c0_22, %c0_23, %c0_24], %18 {strides = array<i32>} : memref<1x4x128xf32, #tpu.memory_space<vmem>>, vector<1x4x128xf32>,
    } else {
    }
    %c0 = arith.constant 0 : index
    %c0_1 = arith.constant 0 : index
    %c0_2 = arith.constant 0 : index
    %c0_3 = arith.constant 0 : index
    %3 = vector.load %arg2[%c0, %c0_1, %c0_2, %c0_3] : memref<1x4x2x128xf32, #tpu.memory_space<vmem>>, vector<1x4x2x128xf32>
    %4 = vector.shape_cast %3 : vector<1x4x2x128xf32> to vector<4x2x128xf32>
    %c0_4 = arith.constant 0 : index
    %c0_5 = arith.constant 0 : index
    %c0_6 = arith.constant 0 : index
    %5 = vector.load %arg3[%c0_4, %c0_5, %c0_6] : memref<1x4x128xf32, #tpu.memory_space<vmem>>, vector<1x4x128xf32>
    %cst = arith.constant dense<0.000000e+00> : vector<4x128xf32>
    %6 = vector.multi_reduction <add>, %4, %cst [1] : vector<4x2x128xf32> to vector<4x128xf32>
    %7 = vector.shape_cast %6 : vector<4x128xf32> to vector<1x4x128xf32>
    %8 = arith.addf %5, %7 : vector<1x4x128xf32>
    %c0_7 = arith.constant 0 : index
    %c0_8 = arith.constant 0 : index
    %c0_9 = arith.constant 0 : index
    %9 = vector.load %arg3[%c0_7, %c0_8, %c0_9] : memref<1x4x128xf32, #tpu.memory_space<vmem>>, vector<1x4x128xf32>
    tpu.vector_store %arg3[%c0_7, %c0_8, %c0_9], %8 {strides = array<i32>} : memref<1x4x128xf32, #tpu.memory_space<vmem>>, vector<1x4x128xf32>,
    %c0_10 = arith.constant 0 : index
    %c0_11 = arith.constant 0 : index
    %c0_12 = arith.constant 0 : index
    %10 = vector.load %arg4[%c0_10, %c0_11, %c0_12] : memref<1x4x128xf32, #tpu.memory_space<vmem>>, vector<1x4x128xf32>
    %11 = arith.mulf %4, %4 : vector<4x2x128xf32>
    %cst_13 = arith.constant dense<0.000000e+00> : vector<4x128xf32>
    %12 = vector.multi_reduction <add>, %11, %cst_13 [1] : vector<4x2x128xf32> to vector<4x128xf32>
    %13 = vector.shape_cast %12 : vector<4x128xf32> to vector<1x4x128xf32>
    %14 = arith.addf %10, %13 : vector<1x4x128xf32>
    %c0_14 = arith.constant 0 : index
    %c0_15 = arith.constant 0 : index
    %c0_16 = arith.constant 0 : index
    %15 = vector.load %arg4[%c0_14, %c0_15, %c0_16] : memref<1x4x128xf32, #tpu.memory_space<vmem>>, vector<1x4x128xf32>
    tpu.vector_store %arg4[%c0_14, %c0_15, %c0_16], %14 {strides = array<i32>} : memref<1x4x128xf32, #tpu.memory_space<vmem>>, vector<1x4x128xf32>,
    return
  }
  func.func @transform_0(%arg0: i32, %arg1: i32) -> (i32, i32, i32, i32) {
    %c0_i32 = arith.constant 0 : i32
    %c0_i32_0 = arith.constant 0 : i32
    %c0_i32_1 = arith.constant 0 : i32
    return %arg0, %c0_i32, %arg1, %c0_i32_0 : i32, i32, i32, i32
  }
  func.func @transform_1(%arg0: i32, %arg1: i32) -> (i32, i32, i32) {
    %c0_i32 = arith.constant 0 : i32
    %c0_i32_0 = arith.constant 0 : i32
    %c0_i32_1 = arith.constant 0 : i32
    return %arg0, %c0_i32, %c0_i32_0 : i32, i32, i32
  }
  func.func @transform_2(%arg0: i32, %arg1: i32) -> (i32, i32, i32) {
    %c0_i32 = arith.constant 0 : i32
    %c0_i32_0 = arith.constant 0 : i32
    %c0_i32_1 = arith.constant 0 : i32
    return %arg0, %c0_i32, %c0_i32_0 : i32, i32, i32
  }
}

</mosaic_0001>

<llo_original>
// kernel: tpu_custom_call.1
$region0: #{tpu_custom_call.1}
  #allocation0 [shape = 'u32[]', space=smem, size = 0x4, offset = 0x4, fixed_abs, tag = 'smem constant byte address 0x4 - core index']
  #allocation1 [shape = 'u32[144,128]{1,0:T(1,128)}', space=vmem, size = 0x12000, scoped, tag = 'internal scratch']
  %s0 = inlined_call_operand.hbm [shape: f32[2,4,2,128], index: 0, kind: input, shape index: {}]
  %s1 = inlined_call_operand.hbm [shape: f32[2,4,128], index: 1, kind: output, shape index: {0}]
  %s2 = inlined_call_operand.hbm [shape: f32[2,4,128], index: 2, kind: output, shape index: {1}]
  %3 = xla_tuple %s1, %s2
  %s4 = sld [smem:[#allocation0]]
  $region53: #{tpu_custom_call.1} parent=0
    _
  %s6 = ssub.s32 1, %s4
  %s7 = scalar_select 0, %s6, %s4
  $region1: #{tpu_custom_call.1} parent=0
    #allocation2 [shape = 'u8[8192]{0}', space=vmem, size = 0x2000, scoped, tag = 'input window, operand 0']
    #allocation3 [shape = 's32[2]{0}', space=sflag, size = 0x8, scoped, tag = 'scoped memory for tpu_custom_call.1']
    #allocation4 [shape = 's32[2]{0}', space=sflag, size = 0x8, scoped, tag = 'scoped memory for tpu_custom_call.1']
    #allocation5 [shape = 'u8[4096]{0}', space=vmem, size = 0x1000, scoped, tag = 'output window, operand 0']
    #allocation6 [shape = 'u8[4096]{0}', space=vmem, size = 0x1000, scoped, tag = 'output window, operand 1']
    #allocation7 [shape = 's32[2]{0}', space=sflag, size = 0x8, scoped, tag = 'scoped memory for tpu_custom_call.1']
    %8 = vsyncpa [#allocation3], 0
    %s9 = scalar_lea.sflag [#allocation3], 1
    %10 = vsyncpa %s9, 0
    %11 = vsyncpa [#allocation4], 0
    %s12 = scalar_lea.sflag [#allocation4], 1
    %13 = vsyncpa %s12, 0
    %14 = vsyncpa [#allocation7], 0
    %s15 = scalar_lea.sflag [#allocation7], 1
    %16 = vsyncpa %s15, 0
    loop: start=0, step=1, limit=4
    $region2: #{tpu_custom_call.1} parent=1 // loop_pre_header
      _
    $region3: #{tpu_custom_call.1} parent=1 // loop_header
      %s18 = sphi 0, %s22
      %p19 = scmp.ge.s32.totalorder %s18, 4
      %s25 = sphi 0, %s37
      %s26 = sphi 0, %s33
      %s27 = sphi 0, %s25
      %s28 = sphi 0, %s26
      %s29 = sphi 0, %s27
      %s30 = sphi 0, %s28
      %s42 = sphi 0, %s44
      %s45 = sphi 0, %s42
      %s46 = sphi 0, %s45
      %s62 = sphi 0, %s46
      %s68 = sphi 0, %s70
      %s71 = sphi 0, %s68
      %s72 = sphi 0, %s71
      %s88 = sphi 0, %s72
      %s94 = sphi 0, %s96
      %s97 = sphi 0, %s94
      %s98 = sphi 0, %s97
      %s114 = sphi 0, %s98
    $region4: #{tpu_custom_call.1} parent=1 // loop_header_branch
      %21 = sbr.rel (%p19) target = $region8
    $region5: #{tpu_custom_call.1} parent=1 // loop_body
      %s23 = ssub.s32 %s18, 1
      %s24 = ssub.s32 %s18, 2
      %s31 = sadd.s32 1, %s26
      %p32 = scmp.ge.s32.totalorder %s31, 1
      %s33 = scalar_select %p32, 0, %s31
      %s34 = sadd.s32 1, %s25
      %s35 = scalar_select %p32, %s34, %s25
      %p36 = scmp.ge.s32.totalorder %s35, 2
      %s37 = scalar_select %p36, 0, %s35
      %s38 = ssub.s32 %s25, %s37
      %s39 = ssub.s32 %s26, %s33
      %s40 = sor.u32 %s38, %s39
      %p41 = scmp.eq.s32.totalorder %s40, 0
      %s43 = sadd.s32 %s42, 1
      %s44 = scalar_select %p41, %s42, %s43
      %p47 = pneg %p41
      %p48 = scmp.eq.s32.totalorder %s18, 1
      %p49 = por %p47, %p48
      %p50 = scmp.ne.s32.totalorder %s42, %s45
      %p51 = scmp.eq.s32.totalorder %s18, 0
      %p52 = por %p50, %p51
      %p53 = scmp.ne.s32.totalorder %s42, %s45
      %p54 = scmp.eq.s32.totalorder %s23, 1
      %p55 = por %p53, %p54
      %p56 = scmp.ne.s32.totalorder %s45, %s46
      %p57 = scmp.eq.s32.totalorder %s23, 0
      %p58 = por %p56, %p57
      %p59 = scmp.ne.s32.totalorder %s45, %s46
      %p60 = scmp.eq.s32.totalorder %s24, 1
      %p61 = por %p59, %p60
      %p63 = scmp.ne.s32.totalorder %s46, %s62
      %p64 = scmp.eq.s32.totalorder %s24, 0
      %p65 = por %p63, %p64
      %s66 = ssub.s32 %s25, %s37
      %p67 = scmp.eq.s32.totalorder %s66, 0
      %s69 = sadd.s32 %s68, 1
      %s70 = scalar_select %p67, %s68, %s69
      %p73 = pneg %p67
      %p74 = scmp.eq.s32.totalorder %s18, 1
      %p75 = por %p73, %p74
      %p76 = scmp.ne.s32.totalorder %s68, %s71
      %p77 = scmp.eq.s32.totalorder %s18, 0
      %p78 = por %p76, %p77
      %p79 = scmp.ne.s32.totalorder %s68, %s71
      %p80 = scmp.eq.s32.totalorder %s23, 1
      %p81 = por %p79, %p80
      %p82 = scmp.ne.s32.totalorder %s71, %s72
      %p83 = scmp.eq.s32.totalorder %s23, 0
      %p84 = por %p82, %p83
      %p85 = scmp.ne.s32.totalorder %s71, %s72
      %p86 = scmp.eq.s32.totalorder %s24, 1
      %p87 = por %p85, %p86
      %p89 = scmp.ne.s32.totalorder %s72, %s88
      %p90 = scmp.eq.s32.totalorder %s24, 0
      %p91 = por %p89, %p90
      %s92 = ssub.s32 %s25, %s37
      %p93 = scmp.eq.s32.totalorder %s92, 0
      %s95 = sadd.s32 %s94, 1
      %s96 = scalar_select %p93, %s94, %s95
      %p99 = pneg %p93
      %p100 = scmp.eq.s32.totalorder %s18, 1
      %p101 = por %p99, %p100
      %p102 = scmp.ne.s32.totalorder %s94, %s97
      %p103 = scmp.eq.s32.totalorder %s18, 0
      %p104 = por %p102, %p103
      %p105 = scmp.ne.s32.totalorder %s94, %s97
      %p106 = scmp.eq.s32.totalorder %s23, 1
      %p107 = por %p105, %p106
      %p108 = scmp.ne.s32.totalorder %s97, %s98
      %p109 = scmp.eq.s32.totalorder %s23, 0
      %p110 = por %p108, %p109
      %p111 = scmp.ne.s32.totalorder %s97, %s98
      %p112 = scmp.eq.s32.totalorder %s24, 1
      %p113 = por %p111, %p112
      %p115 = scmp.ne.s32.totalorder %s98, %s114
      %p116 = scmp.eq.s32.totalorder %s24, 0
      %p117 = por %p115, %p116
      %p118 = scmp.le.s32.totalorder 1, %s18
      %p119 = scmp.lt.s32.totalorder %s18, 3
      %p120 = pnand %p118, %p119
      %p121 = pneg %p120
      // Predicated region
      $region9: #{tpu_custom_call.1} parent=5 // pred_check
        _
      $region10: #{tpu_custom_call.1} parent=5 // pred_check_branch
        %123 = sbr.rel (%p120) target = $region12
      $region11: #{tpu_custom_call.1} parent=5 // pred_region
        %s124 = ssub.s32 %s18, 1
      $region12: #{tpu_custom_call.1} parent=5 // pred_fallthru
        _
      %p125 = scmp.lt.s32.totalorder %s18, 2
      // Predicated region
      $region13: #{tpu_custom_call.1} parent=5 // pred_check
        %p126 = pneg %p125
      $region14: #{tpu_custom_call.1} parent=5 // pred_check_branch
        %128 = sbr.rel (%p126) target = $region16
      $region15: #{tpu_custom_call.1} parent=5 // pred_region
        // Predicated region
        $region17: #{tpu_custom_call.1} parent=15 // pred_check
          %p129 = pneg %p52
        $region18: #{tpu_custom_call.1} parent=15 // pred_check_branch
          %131 = sbr.rel (%p129) target = $region20
        $region19: #{tpu_custom_call.1} parent=15 // pred_region
          %s132 = sand.u32 %s42, 1
          %s133 = scalar_lea.sflag [#allocation3], %s132
          %s134 = sand.u32 %s42, 1
          %s135 = smul.addr %s134, 8
          %s136 = scalar_lea.vmem [#allocation2], %s135
          %s138 = ssub.s32 128, 128
          %139 = vsyncadd %s133, %s138
          %s140 = smul.addr %s25, 4
          %s141 = sadd.s32 %s26, %s140
          %s142 = smul.addr %s141, 32
          %s143 = scalar_lea.hbm %s0, %s142
          %s144 = sshll.u32 %s136, 4
          %s145 = int_to_ptr.vmem [resolvable:$true] %s144
          %150 = dma.hbm_to_vmem [thread:$0]  %s143, 128, %s145, %s133, 32, 32, 2
        $region20: #{tpu_custom_call.1} parent=15 // pred_fallthru
          _
      $region16: #{tpu_custom_call.1} parent=5 // pred_fallthru
        _
      %p151 = scmp.le.s32.totalorder 1, %s18
      %p152 = scmp.lt.s32.totalorder %s18, 3
      %p153 = pnand %p151, %p152
      %p154 = pneg %p153
      // Predicated region
      $region21: #{tpu_custom_call.1} parent=5 // pred_check
        _
      $region22: #{tpu_custom_call.1} parent=5 // pred_check_branch
        %156 = sbr.rel (%p153) target = $region24
      $region23: #{tpu_custom_call.1} parent=5 // pred_region
        %s157 = ssub.s32 %s18, 1
        %s158 = sand.u32 %s45, 1
        %s159 = scalar_lea.sflag [#allocation3], %s158
        %s160 = sand.u32 %s45, 1
        %s161 = smul.addr %s160, 8
        %s162 = scalar_lea.vmem [#allocation2], %s161
        // Predicated region
        $region25: #{tpu_custom_call.1} parent=23 // pred_check
          %p163 = pneg %p58
        $region26: #{tpu_custom_call.1} parent=23 // pred_check_branch
          %165 = sbr.rel (%p163) target = $region28
        $region27: #{tpu_custom_call.1} parent=23 // pred_region
          %166 = dma.done %s159, 128
        $region28: #{tpu_custom_call.1} parent=23 // pred_fallthru
          _
        %s167 = sand.u32 %s45, 1
        %s168 = scalar_lea.sflag [#allocation3], %s167
        %s169 = sand.u32 %s45, 1
        %s170 = smul.addr %s169, 8
        %s171 = scalar_lea.vmem [#allocation2], %s170
        %p172 = pneg %p58
        %p173 = pneg %p55
        %p174 = pneg %p84
        %p175 = pneg %p81
        %s176 = sand.u32 %s71, 1
        %s177 = scalar_lea.sflag [#allocation4], %s176
        %s178 = sand.u32 %s71, 1
        %s179 = smul.addr %s178, 4
        %s180 = scalar_lea.vmem [#allocation5], %s179
        %p181 = pneg %p110
        %p182 = pneg %p107
        %s183 = sand.u32 %s97, 1
        %s184 = scalar_lea.sflag [#allocation7], %s183
        %s185 = sand.u32 %s97, 1
        %s186 = smul.addr %s185, 4
        %s187 = scalar_lea.vmem [#allocation6], %s186
        %p188 = scmp.eq.s32.totalorder %s28, 0
        // Predicated region
        $region29: #{tpu_custom_call.1} parent=23 // pred_check
          %p189 = pneg %p188
        $region30: #{tpu_custom_call.1} parent=23 // pred_check_branch
          %191 = sbr.rel (%p189) target = $region32
        $region31: #{tpu_custom_call.1} parent=23 // pred_region
          %192 = vst [vmem:[%s180] sm:$0xf] 0.0
          %193 = vst [vmem:[%s187] sm:$0xf] 0.0
        $region32: #{tpu_custom_call.1} parent=23 // pred_fallthru
          _
        %v194 = vld [vmem:[%s162] sm:$0x3]
        %v195 = vld [vmem:[%s162 + $0x2] sm:$0x3]
        %v196 = vld [vmem:[%s162 + $0x4] sm:$0x3]
        %v197 = vld [vmem:[%s162 + $0x6] sm:$0x3]
        %v198 = vld [vmem:[%s180] sm:$0xf]
        %vm199 = vcmask 1041408
        %v200 = vsel %vm199, %v194, 0.0
        %v201 = vrot.slane %v200, 4
        %v202 = vadd.f32 %v200, %v201
        %v203 = vrot.slane %v202, 2
        %v204 = vadd.f32 %v202, %v203
        %v205 = vrot.slane %v204, 1
        %v206 = vadd.f32 %v204, %v205
        %v207 = vsel %vm199, %v195, 0.0
        %v208 = vrot.slane %v207, 4
        %v209 = vadd.f32 %v207, %v208
        %v210 = vrot.slane %v209, 2
        %v211 = vadd.f32 %v209, %v210
        %v212 = vrot.slane %v211, 1
        %v213 = vadd.f32 %v211, %v212
        %v214 = vsel %vm199, %v196, 0.0
        %v215 = vrot.slane %v214, 4
        %v216 = vadd.f32 %v214, %v215
        %v217 = vrot.slane %v216, 2
        %v218 = vadd.f32 %v216, %v217
        %v219 = vrot.slane %v218, 1
        %v220 = vadd.f32 %v218, %v219
        %v221 = vsel %vm199, %v197, 0.0
        %v222 = vrot.slane %v221, 4
        %v223 = vadd.f32 %v221, %v222
        %v224 = vrot.slane %v223, 2
        %v225 = vadd.f32 %v223, %v224
        %v226 = vrot.slane %v225, 1
        %v227 = vadd.f32 %v225, %v226
        %vm232 = vcmask 1041409
        %v233 = vsel %vm232, %v213, %v206
        %vm234 = vcmask 1042434
        %v235 = vsel %vm234, %v220, %v233
        %vm236 = vcmask 1043459
        %v237 = vsel %vm236, %v227, %v235
        %v239 = vadd.f32 %v198, %v237
        %240 = vst [vmem:[%s180] sm:$0xf] %v239
        %v241 = vld [vmem:[%s187] sm:$0xf]
        %v242 = vmul.f32 %v194, %v194
        %v243 = vmul.f32 %v195, %v195
        %v244 = vmul.f32 %v196, %v196
        %v245 = vmul.f32 %v197, %v197
        %v246 = vsel %vm199, %v242, 0.0
        %v247 = vrot.slane %v246, 4
        %v248 = vadd.f32 %v246, %v247
        %v249 = vrot.slane %v248, 2
        %v250 = vadd.f32 %v248, %v249
        %v251 = vrot.slane %v250, 1
        %v252 = vadd.f32 %v250, %v251
        %v253 = vsel %vm199, %v243, 0.0
        %v254 = vrot.slane %v253, 4
        %v255 = vadd.f32 %v253, %v254
        %v256 = vrot.slane %v255, 2
        %v257 = vadd.f32 %v255, %v256
        %v258 = vrot.slane %v257, 1
        %v259 = vadd.f32 %v257, %v258
        %v260 = vsel %vm199, %v244, 0.0
        %v261 = vrot.slane %v260, 4
        %v262 = vadd.f32 %v260, %v261
        %v263 = vrot.slane %v262, 2
        %v264 = vadd.f32 %v262, %v263
        %v265 = vrot.slane %v264, 1
        %v266 = vadd.f32 %v264, %v265
        %v267 = vsel %vm199, %v245, 0.0
        %v268 = vrot.slane %v267, 4
        %v269 = vadd.f32 %v267, %v268
        %v270 = vrot.slane %v269, 2
        %v271 = vadd.f32 %v269, %v270
        %v272 = vrot.slane %v271, 1
        %v273 = vadd.f32 %v271, %v272
        %v278 = vsel %vm232, %v259, %v252
        %v279 = vsel %vm234, %v266, %v278
        %v280 = vsel %vm236, %v273, %v279
        %v282 = vadd.f32 %v241, %v280
        %283 = vst [vmem:[%s187] sm:$0xf] %v282
        %s284 = sand.u32 %s71, 1
        %s285 = scalar_lea.sflag [#allocation4], %s284
        %s286 = sand.u32 %s71, 1
        %s287 = smul.addr %s286, 4
        %s288 = scalar_lea.vmem [#allocation5], %s287
        %s289 = sand.u32 %s97, 1
        %s290 = scalar_lea.sflag [#allocation7], %s289
        %s291 = sand.u32 %s97, 1
        %s292 = smul.addr %s291, 4
        %s293 = scalar_lea.vmem [#allocation6], %s292
        // Predicated region
        $region33: #{tpu_custom_call.1} parent=23 // pred_check
          %p294 = pneg %p81
        $region34: #{tpu_custom_call.1} parent=23 // pred_check_branch
          %296 = sbr.rel (%p294) target = $region36
        $region35: #{tpu_custom_call.1} parent=23 // pred_region
          %s298 = ssub.s32 64, 64
          %299 = vsyncadd %s285, %s298
          %s300 = smul.addr %s27, 64
          %s301 = scalar_lea.hbm %s1, %s300
          %s303 = sshll.u32 %s288, 4
          %s304 = int_to_ptr.vmem [resolvable:$true] %s303
          %306 = dma.vmem_to_hbm [thread:$0]  %s304, 64, %s301, %s285
        $region36: #{tpu_custom_call.1} parent=23 // pred_fallthru
          _
        // Predicated region
        $region37: #{tpu_custom_call.1} parent=23 // pred_check
          %p307 = pneg %p107
        $region38: #{tpu_custom_call.1} parent=23 // pred_check_branch
          %309 = sbr.rel (%p307) target = $region40
        $region39: #{tpu_custom_call.1} parent=23 // pred_region
          %s311 = ssub.s32 64, 64
          %312 = vsyncadd %s290, %s311
          %s313 = smul.addr %s27, 64
          %s314 = scalar_lea.hbm %s2, %s313
          %s316 = sshll.u32 %s293, 4
          %s317 = int_to_ptr.vmem [resolvable:$true] %s316
          %319 = dma.vmem_to_hbm [thread:$0]  %s317, 64, %s314, %s290
        $region40: #{tpu_custom_call.1} parent=23 // pred_fallthru
          _
      $region24: #{tpu_custom_call.1} parent=5 // pred_fallthru
        _
      %p320 = scmp.le.s32.totalorder 2, %s18
      // Predicated region
      $region41: #{tpu_custom_call.1} parent=5 // pred_check
        %p321 = pneg %p320
      $region42: #{tpu_custom_call.1} parent=5 // pred_check_branch
        %323 = sbr.rel (%p321) target = $region44
      $region43: #{tpu_custom_call.1} parent=5 // pred_region
        %s324 = ssub.s32 %s18, 2
        // Predicated region
        $region45: #{tpu_custom_call.1} parent=43 // pred_check
          %p325 = pneg %p87
        $region46: #{tpu_custom_call.1} parent=43 // pred_check_branch
          %327 = sbr.rel (%p325) target = $region48
        $region47: #{tpu_custom_call.1} parent=43 // pred_region
          %s328 = sand.u32 %s72, 1
          %s329 = scalar_lea.sflag [#allocation4], %s328
          %s330 = sand.u32 %s72, 1
          %s331 = smul.addr %s330, 4
          %s332 = scalar_lea.vmem [#allocation5], %s331
          %333 = dma.done %s329, 64
        $region48: #{tpu_custom_call.1} parent=43 // pred_fallthru
          _
        // Predicated region
        $region49: #{tpu_custom_call.1} parent=43 // pred_check
          %p334 = pneg %p113
        $region50: #{tpu_custom_call.1} parent=43 // pred_check_branch
          %336 = sbr.rel (%p334) target = $region52
        $region51: #{tpu_custom_call.1} parent=43 // pred_region
          %s337 = sand.u32 %s98, 1
          %s338 = scalar_lea.sflag [#allocation7], %s337
          %s339 = sand.u32 %s98, 1
          %s340 = smul.addr %s339, 4
          %s341 = scalar_lea.vmem [#allocation6], %s340
          %342 = dma.done %s338, 64
        $region52: #{tpu_custom_call.1} parent=43 // pred_fallthru
          _
      $region44: #{tpu_custom_call.1} parent=5 // pred_fallthru
        _
    $region6: #{tpu_custom_call.1} parent=1 // loop_footer
      %s22 = sadd.s32 1, %s18
    $region7: #{tpu_custom_call.1} parent=1 // loop_footer_branch
      %17 = sbr.rel target = $region3
    $region8: #{tpu_custom_call.1} parent=1 // loop_exit
      _
    %343 = vsyncpa [#allocation3], 1
    %s344 = scalar_lea.sflag [#allocation3], 1
    %345 = vsyncpa %s344, 1
    %346 = vsyncpa [#allocation4], 1
    %s347 = scalar_lea.sflag [#allocation4], 1
    %348 = vsyncpa %s347, 1
    %349 = vsyncpa [#allocation7], 1
    %s350 = scalar_lea.sflag [#allocation7], 1
    %351 = vsyncpa %s350, 1

</llo_original>
